<compile_context>
chip_gen: v5e
topology: v5e:2x2
jax: 0.10.0
libtpu: 0.0.40
codegen_flags: <defaults>
</compile_context>

<pallas_src>
import jax
import jax.numpy as jnp
from jax.experimental import pallas as pl
from jax.experimental.pallas import tpu as pltpu


# ----------------------------------------------------------------------------
# Kernel: one (batch-tile i, hidden-chunk k) grid step.
# ----------------------------------------------------------------------------
def mlp_kernel(x_ref, w1_ref, b1_ref, w2_ref, b2_ref, o_ref, acc_ref):
    k = pl.program_id(1)

    @pl.when(k == 0)
    def _init():
        acc_ref[...] = jnp.zeros_like(acc_ref)

    # Hidden chunk: MXU matmul with f32 accumulation; bias + ReLU on VPU in f32.
    h = jnp.dot(x_ref[...], w1_ref[...], preferred_element_type=jnp.float32)
    h = jnp.maximum(h + b1_ref[...].astype(jnp.float32), 0.0)

    # Accumulate this chunk's contribution to the (lane-padded) output in f32.
    acc_ref[...] += jnp.dot(h.astype(w2_ref.dtype), w2_ref[...],
                            preferred_element_type=jnp.float32)

    @pl.when(k == pl.num_programs(1) - 1)
    def _finalize():
        o_ref[...] = (acc_ref[...] + b2_ref[...].astype(jnp.float32)).astype(o_ref.dtype)


# ----------------------------------------------------------------------------
# Tiling helpers.
# ----------------------------------------------------------------------------
def _round_up(x, m):
    return ((x + m - 1) // m) * m


def _vmem_capacity_bytes():
    """Physical VMEM per TensorCore; conservative 64 MiB (v7x) fallback."""
    try:
        return int(pltpu.get_tpu_info().vmem_capacity_bytes)
    except Exception:
        return 64 * 1024 * 1024


def _pick_bh(H, max_bh=512):
    """Hidden-chunk size: H itself if small, else a 128-multiple divisor <= 512."""
    if H <= max_bh:
        return H
    for cand in range(max_bh, 127, -128):
        if H % cand == 0:
            return cand
    return H  # no clean 128-multiple divisor: keep H in one chunk


def _pick_bm(B, D_in, Np, bh, w_itemsize, x_itemsize, budget):
    """Largest batch tile (multiple of 8, divisor of B, <=1024) fitting the budget."""

    def est(bm):
        # double-buffered streaming tiles + f32 accumulator + hidden-chunk slack
        weights = 2 * (D_in * bh + bh * Np) * w_itemsize + 2 * (8 * bh + 8 * Np) * 4
        x_io = 2 * bm * D_in * x_itemsize + 2 * bm * Np * 4
        scratch = bm * Np * 4 + bm * bh * 4
        return weights + x_io + scratch

    cands = sorted({d for d in range(8, min(B, 1024) + 1, 8) if B % d == 0} | {B})
    fitting = [bm for bm in cands if est(bm) <= budget]
    if not fitting:
        return min(cands)
    # For large batches prefer >=2 grid steps so v7x's 2nd TensorCore gets work.
    if B >= 512:
        multi = [bm for bm in fitting if B // bm >= 2]
        if multi:
            return max(multi)
    return max(fitting)


# ----------------------------------------------------------------------------
# Wrapper.
# ----------------------------------------------------------------------------
def mlp_forward(x, w1, b1, w2, b2, *, bm=None, bh=None, compute_dtype=None):
    """2-layer MLP forward: ReLU(x @ W1 + b1) @ W2 + b2.

    x  : (B, D_in)
    w1 : (D_in, H),  b1: (H,)       -- pre-transposed vs. PyTorch's (H, D_in)
    w2 : (H, D_out), b2: (D_out,)
    compute_dtype: dtype used for the MXU matmul inputs (e.g. jnp.bfloat16 on
                   v6e/v7x).  Accumulation, bias add and ReLU stay in f32.
    """
    B, D_in = x.shape
    H = w1.shape[1]
    D_out = w2.shape[1]
    assert w1.shape == (D_in, H) and b1.shape == (H,)
    assert w2.shape == (H, D_out) and b2.shape == (D_out,)

    out_dtype = x.dtype
    compute_dtype = jnp.dtype(x.dtype if compute_dtype is None else compute_dtype)

    # Lane-dense output: pad D_out up to a multiple of 128 (avoids masked
    # partial stores on the last dim); sliced back below.
    Np = max(128, _round_up(D_out, 128))
    w2p = jnp.zeros((H, Np), compute_dtype).at[:, :D_out].set(w2.astype(compute_dtype))
    b2p = jnp.zeros((1, Np), jnp.float32).at[0, :D_out].set(b2.astype(jnp.float32))

    xq = x.astype(compute_dtype)
    w1q = w1.astype(compute_dtype)
    b1r = b1.astype(jnp.float32).reshape(1, H)

    capacity = _vmem_capacity_bytes()
    budget = capacity // 2  # headroom for compiler scratch / pipelining slack

    if bh is None:
        bh = _pick_bh(H)
    assert H % bh == 0
    if bm is None:
        bm = _pick_bm(B, D_in, Np, bh,
                      compute_dtype.itemsize, compute_dtype.itemsize, budget)
    assert B % bm == 0
    assert bm % 8 == 0 or bm == B, "bm must be a multiple of 8 (f32 sublane) or equal B"

    grid = (B // bm, H // bh)

    flops = int(2 * B * D_in * H + 2 * B * H * Np)
    bytes_accessed = int(xq.size * xq.dtype.itemsize
                         + w1q.size * w1q.dtype.itemsize
                         + b1r.size * 4
                         + w2p.size * w2p.dtype.itemsize
                         + b2p.size * 4
                         + B * Np * jnp.dtype(out_dtype).itemsize)

    out_padded = pl.pallas_call(
        mlp_kernel,
        out_shape=jax.ShapeDtypeStruct((B, Np), out_dtype),
        grid_spec=pltpu.PrefetchScalarGridSpec(
            num_scalar_prefetch=0,
            grid=grid,
            in_specs=[
                pl.BlockSpec((bm, D_in), lambda i, k: (i, 0)),   # x batch tile
                pl.BlockSpec((D_in, bh), lambda i, k: (0, k)),   # W1 hidden chunk
                pl.BlockSpec((1, bh),    lambda i, k: (0, k)),   # b1 chunk
                pl.BlockSpec((bh, Np),   lambda i, k: (k, 0)),   # W2 hidden chunk
                pl.BlockSpec((1, Np),    lambda i, k: (0, 0)),   # b2 (grid-invariant)
            ],
            out_specs=pl.BlockSpec((bm, Np), lambda i, k: (i, 0)),
            scratch_shapes=[pltpu.VMEM((bm, Np), jnp.float32)],  # f32 accumulator
        ),
        compiler_params=pltpu.CompilerParams(
            dimension_semantics=("parallel", "arbitrary"),
            vmem_limit_bytes=int(min(capacity * 3 // 4, 96 * 1024 * 1024)),
        ),
        cost_estimate=pl.CostEstimate(
            flops=flops, transcendentals=0, bytes_accessed=bytes_accessed),
    )(xq, w1q, b1r, w2p, b2p)

    return out_padded[:, :D_out]


# ----------------------------------------------------------------------------
# Deterministic init mimicking nn.Linear's U(-1/sqrt(fan_in), 1/sqrt(fan_in)).
# ----------------------------------------------------------------------------
def init_mlp_params(key, input_dim, hidden_dim, output_dim):
    k1, k2, k3, k4 = jax.random.split(key, 4)
    lim1 = 1.0 / jnp.sqrt(jnp.float32(input_dim))
    lim2 = 1.0 / jnp.sqrt(jnp.float32(hidden_dim))
    # Stored pre-transposed: (in_features, out_features).
    w1 = jax.random.uniform(k1, (input_dim, hidden_dim), jnp.float32, -lim1, lim1)
    b1 = jax.random.uniform(k2, (hidden_dim,), jnp.float32, -lim1, lim1)
    w2 = jax.random.uniform(k3, (hidden_dim, output_dim), jnp.float32, -lim2, lim2)
    b2 = jax.random.uniform(k4, (output_dim,), jnp.float32, -lim2, lim2)
    return w1, b1, w2, b2


def _ref(x, w1, b1, w2, b2):
    return jnp.maximum(x @ w1 + b1, 0.0) @ w2 + b2


if __name__ == "__main__":
    key = jax.random.PRNGKey(0)

    # ---- Small shapes consistent with the module: board features -> 7 actions.
    B, D_IN, HIDDEN, D_OUT = 8, 32, 64, 7
    kx, kp, kx2, kp2 = jax.random.split(key, 4)
    x = jax.random.normal(kx, (B, D_IN), jnp.float32)
    w1, b1, w2, b2 = init_mlp_params(kp, D_IN, HIDDEN, D_OUT)

    out = jax.block_until_ready(mlp_forward(x, w1, b1, w2, b2))
    ref = _ref(x, w1, b1, w2, b2)
    assert out.shape == (B, D_OUT)
    assert jnp.allclose(out, ref, atol=1e-5, rtol=1e-5)

    # bf16 matmul path (v6e/v7x MXU fast path), f32 accumulation — loose check.
    out_bf16 = jax.block_until_ready(
        mlp_forward(x, w1, b1, w2, b2, compute_dtype=jnp.bfloat16))
    assert jnp.allclose(out_bf16, ref, atol=1e-1, rtol=1e-1)

    # ---- Larger case exercising hidden-dim tiling (grid k axis > 1).
    B2, D_IN2, HIDDEN2, D_OUT2 = 256, 256, 1024, 7
    x2 = jax.random.normal(kx2, (B2, D_IN2), jnp.float32)
    w1b, b1b, w2b, b2b = init_mlp_params(kp2, D_IN2, HIDDEN2, D_OUT2)
    out2 = jax.block_until_ready(mlp_forward(x2, w1b, b1b, w2b, b2b))
    ref2 = _ref(x2, w1b, b1b, w2b, b2b)
    assert out2.shape == (B2, D_OUT2)
    assert jnp.allclose(out2, ref2, atol=1e-4, rtol=1e-4)

    print("KERNEL_OK")
</pallas_src>

<mosaic_0001>
module attributes {stable_mosaic.version = 11 : i64} {
  func.func @mlp_kernel(%arg0: i32, %arg1: i32, %arg2: memref<8x32xf32, #tpu.memory_space<vmem>>, %arg3: memref<32x64xf32, #tpu.memory_space<vmem>>, %arg4: memref<1x64xf32, #tpu.memory_space<vmem>>, %arg5: memref<64x128xf32, #tpu.memory_space<vmem>>, %arg6: memref<1x128xf32, #tpu.memory_space<vmem>>, %arg7: memref<8x128xf32, #tpu.memory_space<vmem>>, %arg8: memref<8x128xf32, #tpu.memory_space<vmem>>) attributes {dimension_semantics = [#tpu.dimension_semantics<parallel>, #tpu.dimension_semantics<arbitrary>], iteration_bounds = array<i64: 1, 1>, scalar_prefetch = 0 : i64, scratch_operands = 1 : i64, tpu.core_type = #tpu.core_type<tc>, window_params = [{transform_indices = @transform_0, window_bounds = array<i64: 8, 32>}, {transform_indices = @transform_1, window_bounds = array<i64: 32, 64>}, {transform_indices = @transform_2, window_bounds = array<i64: 1, 64>}, {transform_indices = @transform_3, window_bounds = array<i64: 64, 128>}, {pipeline_mode = #tpu.pipeline_mode<synchronous>, transform_indices = @transform_4, window_bounds = array<i64: 1, 128>}, {transform_indices = @transform_5, window_bounds = array<i64: 8, 128>}]} {
    %c0_i32 = arith.constant 0 : i32
    %0 = arith.cmpi eq, %arg1, %c0_i32 : i32
    %1 = arith.extui %0 : i1 to i32
    %c0_i32_0 = arith.constant 0 : i32
    %2 = arith.cmpi ne, %1, %c0_i32_0 : i32
    scf.if %2 {
      %cst_16 = arith.constant 0.000000e+00 : f32
      %19 = vector.broadcast %cst_16 : f32 to vector<8x128xf32>
      %c0_17 = arith.constant 0 : index
      %c0_18 = arith.constant 0 : index
      %20 = vector.load %arg8[%c0_17, %c0_18] : memref<8x128xf32, #tpu.memory_space<vmem>>, vector<8x128xf32>
      tpu.vector_store %arg8[%c0_17, %c0_18], %19 {strides = array<i32>} : memref<8x128xf32, #tpu.memory_space<vmem>>, vector<8x128xf32>,
    } else {
    }
    %c0 = arith.constant 0 : index
    %c0_1 = arith.constant 0 : index
    %3 = vector.load %arg2[%c0, %c0_1] : memref<8x32xf32, #tpu.memory_space<vmem>>, vector<8x32xf32>
    %c0_2 = arith.constant 0 : index
    %c0_3 = arith.constant 0 : index
    %4 = vector.load %arg3[%c0_2, %c0_3] : memref<32x64xf32, #tpu.memory_space<vmem>>, vector<32x64xf32>
    %cst = arith.constant dense<0.000000e+00> : vector<8x64xf32>
    %5 = tpu.matmul %3, %4, %cst {dimension_numbers = #tpu.dot_dimension_numbers<[1], [0], [0], [1], [0, 0, 1, 1], [], []>} : vector<8x32xf32>, vector<32x64xf32>, vector<8x64xf32> -> vector<8x64xf32>
    %c0_4 = arith.constant 0 : index
    %c0_5 = arith.constant 0 : index
    %6 = vector.load %arg4[%c0_4, %c0_5] : memref<1x64xf32, #tpu.memory_space<vmem>>, vector<1x64xf32>
    %7 = vector.broadcast %6 : vector<1x64xf32> to vector<8x64xf32>
    %8 = arith.addf %5, %7 : vector<8x64xf32>
    %cst_6 = arith.constant 0.000000e+00 : f32
    %9 = vector.broadcast %cst_6 : f32 to vector<8x64xf32>
    %10 = arith.maximumf %8, %9 : vector<8x64xf32>
    %c0_7 = arith.constant 0 : index
    %c0_8 = arith.constant 0 : index
    %11 = vector.load %arg8[%c0_7, %c0_8] : memref<8x128xf32, #tpu.memory_space<vmem>>, vector<8x128xf32>
    %c0_9 = arith.constant 0 : index
    %c0_10 = arith.constant 0 : index
    %12 = vector.load %arg5[%c0_9, %c0_10] : memref<64x128xf32, #tpu.memory_space<vmem>>, vector<64x128xf32>
    %cst_11 = arith.constant dense<0.000000e+00> : vector<8x128xf32>
    %13 = tpu.matmul %10, %12, %cst_11 {dimension_numbers = #tpu.dot_dimension_numbers<[1], [0], [0], [1], [0, 0, 1, 1], [], []>} : vector<8x64xf32>, vector<64x128xf32>, vector<8x128xf32> -> vector<8x128xf32>
    %14 = arith.addf %11, %13 : vector<8x128xf32>
    %c0_12 = arith.constant 0 : index
    %c0_13 = arith.constant 0 : index
    %15 = vector.load %arg8[%c0_12, %c0_13] : memref<8x128xf32, #tpu.memory_space<vmem>>, vector<8x128xf32>
    tpu.vector_store %arg8[%c0_12, %c0_13], %14 {strides = array<i32>} : memref<8x128xf32, #tpu.memory_space<vmem>>, vector<8x128xf32>,
    %c0_i32_14 = arith.constant 0 : i32
    %16 = arith.cmpi eq, %arg1, %c0_i32_14 : i32
    %17 = arith.extui %16 : i1 to i32
    %c0_i32_15 = arith.constant 0 : i32
    %18 = arith.cmpi ne, %17, %c0_i32_15 : i32
    scf.if %18 {
      %c0_16 = arith.constant 0 : index
      %c0_17 = arith.constant 0 : index
      %19 = vector.load %arg8[%c0_16, %c0_17] : memref<8x128xf32, #tpu.memory_space<vmem>>, vector<8x128xf32>
      %c0_18 = arith.constant 0 : index
      %c0_19 = arith.constant 0 : index
      %20 = vector.load %arg6[%c0_18, %c0_19] : memref<1x128xf32, #tpu.memory_space<vmem>>, vector<1x128xf32>
      %21 = vector.broadcast %20 : vector<1x128xf32> to vector<8x128xf32>
      %22 = arith.addf %19, %21 : vector<8x128xf32>
      %c0_20 = arith.constant 0 : index
      %c0_21 = arith.constant 0 : index
      %23 = vector.load %arg7[%c0_20, %c0_21] : memref<8x128xf32, #tpu.memory_space<vmem>>, vector<8x128xf32>
      tpu.vector_store %arg7[%c0_20, %c0_21], %22 {strides = array<i32>} : memref<8x128xf32, #tpu.memory_space<vmem>>, vector<8x128xf32>,
    } else {
    }
    return
  }
  func.func @transform_0(%arg0: i32, %arg1: i32) -> (i32, i32) {
    %c0_i32 = arith.constant 0 : i32
    %c0_i32_0 = arith.constant 0 : i32
    return %arg0, %c0_i32 : i32, i32
  }
  func.func @transform_1(%arg0: i32, %arg1: i32) -> (i32, i32) {
    %c0_i32 = arith.constant 0 : i32
    %c0_i32_0 = arith.constant 0 : i32
    return %c0_i32, %arg1 : i32, i32
  }
  func.func @transform_2(%arg0: i32, %arg1: i32) -> (i32, i32) {
    %c0_i32 = arith.constant 0 : i32
    %c0_i32_0 = arith.constant 0 : i32
    return %c0_i32, %arg1 : i32, i32
  }
  func.func @transform_3(%arg0: i32, %arg1: i32) -> (i32, i32) {
    %c0_i32 = arith.constant 0 : i32
    %c0_i32_0 = arith.constant 0 : i32
    return %arg1, %c0_i32 : i32, i32
  }
  func.func @transform_4(%arg0: i32, %arg1: i32) -> (i32, i32) {
    %c0_i32 = arith.constant 0 : i32
    %c0_i32_0 = arith.constant 0 : i32
    %c0_i32_1 = arith.constant 0 : i32
    return %c0_i32, %c0_i32_0 : i32, i32
  }
  func.func @transform_5(%arg0: i32, %arg1: i32) -> (i32, i32) {
    %c0_i32 = arith.constant 0 : i32
    %c0_i32_0 = arith.constant 0 : i32
    return %arg0, %c0_i32 : i32, i32
  }
}

</mosaic_0001>

<llo_original>
// kernel: tpu_custom_call.1
$region0: #{tpu_custom_call.1}
  #allocation0 [shape = 'u32[]', space=smem, size = 0x4, offset = 0x4, fixed_abs, tag = 'smem constant byte address 0x4 - core index']
  #allocation1 [shape = 'u32[72,128]{1,0:T(1,128)}', space=vmem, size = 0x9000, scoped, tag = 'internal scratch']
  #allocation2 [shape = 'f32[8,128]{1,0:T(8,128)}', space=vmem, size = 0x1000, scoped, tag = 'scratch operand']
  %s0 = inlined_call_operand.hbm [shape: f32[8,32], index: 0, kind: input, shape index: {}]
  %s1 = inlined_call_operand.hbm [shape: f32[32,64], index: 1, kind: input, shape index: {}]
  %s2 = inlined_call_operand.vmem [shape: f32[1,64], index: 2, kind: input, shape index: {}]
  %s3 = inlined_call_operand.hbm [shape: f32[64,128], index: 3, kind: input, shape index: {}]
  %s4 = inlined_call_operand.vmem [shape: f32[1,128], index: 4, kind: input, shape index: {}]
  %s5 = inlined_call_operand.hbm [shape: f32[8,128], index: 5, kind: output, shape index: {}]
  %s6 = sld [smem:[#allocation0]]
  $region50: #{tpu_custom_call.1} parent=0
    _
  %s8 = ssub.s32 1, %s6
  %s9 = scalar_select 0, %s8, %s6
  $region1: #{tpu_custom_call.1} parent=0
    #allocation3 [shape = 'u8[4096]{0}', space=vmem, size = 0x1000, scoped, tag = 'input window, operand 0, single buffered']
    #allocation4 [shape = 's32[1]{0}', space=sflag, size = 0x4, scoped, tag = 'scoped memory for tpu_custom_call.1']
    #allocation5 [shape = 's32[1]{0}', space=sflag, size = 0x4, scoped, tag = 'scoped memory for tpu_custom_call.1']
    #allocation6 [shape = 'u8[16384]{0}', space=vmem, size = 0x4000, scoped, tag = 'input window, operand 1, single buffered']
    #allocation7 [shape = 's32[1]{0}', space=sflag, size = 0x4, scoped, tag = 'scoped memory for tpu_custom_call.1']
    #allocation8 [shape = 'u8[32768]{0}', space=vmem, size = 0x8000, scoped, tag = 'input window, operand 3, single buffered']
    #allocation9 [shape = 'u8[4096]{0}', space=vmem, size = 0x1000, scoped, tag = 'output window, operand 0, single buffered']
    %10 = vsyncpa [#allocation4], 0
    %11 = vsyncpa [#allocation7], 0
    %12 = vsyncpa [#allocation5], 0
    // Predicated region
    $region2: #{tpu_custom_call.1} parent=1 // pred_check
      _
    $region3: #{tpu_custom_call.1} parent=1 // pred_check_branch
      %14 = sbr.rel (0) target = $region5
    $region4: #{tpu_custom_call.1} parent=1 // pred_region
      %16 = vsyncadd [#allocation4], 0
      %s18 = sshll.u32 %s0, 4
      %s19 = int_to_ptr.hbm [resolvable:$true] %s18
      %s20 = sshll.u32 [#allocation3], 4
      %s21 = int_to_ptr.vmem [resolvable:$true] %s20
      %23 = dma.hbm_to_vmem [thread:$0]  %s19, 128, %s21, [#allocation4]
    $region5: #{tpu_custom_call.1} parent=1 // pred_fallthru
      _
    // Predicated region
    $region6: #{tpu_custom_call.1} parent=1 // pred_check
      _
    $region7: #{tpu_custom_call.1} parent=1 // pred_check_branch
      %25 = sbr.rel (0) target = $region9
    $region8: #{tpu_custom_call.1} parent=1 // pred_region
      %27 = vsyncadd [#allocation7], 0
      %s28 = sshll.u32 %s1, 4
      %s29 = int_to_ptr.hbm [resolvable:$true] %s28
      %s30 = sshll.u32 [#allocation6], 4
      %s31 = int_to_ptr.vmem [resolvable:$true] %s30
      %36 = dma.hbm_to_vmem [thread:$0]  %s29, 512, %s31, [#allocation7], 128, 128, 8
    $region9: #{tpu_custom_call.1} parent=1 // pred_fallthru
      _
    // Predicated region
    $region10: #{tpu_custom_call.1} parent=1 // pred_check
      _
    $region11: #{tpu_custom_call.1} parent=1 // pred_check_branch
      %38 = sbr.rel (0) target = $region13
    $region12: #{tpu_custom_call.1} parent=1 // pred_region
      _
    $region13: #{tpu_custom_call.1} parent=1 // pred_fallthru
      _
    // Predicated region
    $region14: #{tpu_custom_call.1} parent=1 // pred_check
      _
    $region15: #{tpu_custom_call.1} parent=1 // pred_check_branch
      %40 = sbr.rel (0) target = $region17
    $region16: #{tpu_custom_call.1} parent=1 // pred_region
      %42 = vsyncadd [#allocation7], 0
      %s43 = sshll.u32 %s3, 4
      %s44 = int_to_ptr.hbm [resolvable:$true] %s43
      %s45 = sshll.u32 [#allocation8], 4
      %s46 = int_to_ptr.vmem [resolvable:$true] %s45
      %51 = dma.hbm_to_vmem [thread:$0]  %s44, 1024, %s46, [#allocation7], 128, 128, 8
    $region17: #{tpu_custom_call.1} parent=1 // pred_fallthru
      _
    // Predicated region
    $region18: #{tpu_custom_call.1} parent=1 // pred_check
      _
    $region19: #{tpu_custom_call.1} parent=1 // pred_check_branch
      %53 = sbr.rel (0) target = $region21
    $region20: #{tpu_custom_call.1} parent=1 // pred_region
      _
    $region21: #{tpu_custom_call.1} parent=1 // pred_fallthru
      _
    // Predicated region
    $region22: #{tpu_custom_call.1} parent=1 // pred_check
      _
    $region23: #{tpu_custom_call.1} parent=1 // pred_check_branch
      %55 = sbr.rel (0) target = $region25
    $region24: #{tpu_custom_call.1} parent=1 // pred_region
      %57 = dma.done [#allocation4], 128
    $region25: #{tpu_custom_call.1} parent=1 // pred_fallthru
      _
    // Predicated region
    $region26: #{tpu_custom_call.1} parent=1 // pred_check
      _
    $region27: #{tpu_custom_call.1} parent=1 // pred_check_branch
      %59 = sbr.rel (0) target = $region29
    $region28: #{tpu_custom_call.1} parent=1 // pred_region
      %61 = dma.done [#allocation7], 512
    $region29: #{tpu_custom_call.1} parent=1 // pred_fallthru
      _
    // Predicated region
    $region30: #{tpu_custom_call.1} parent=1 // pred_check
      _
    $region31: #{tpu_custom_call.1} parent=1 // pred_check_branch
      %63 = sbr.rel (0) target = $region33
    $region32: #{tpu_custom_call.1} parent=1 // pred_region
      %65 = dma.done [#allocation7], 1024
    $region33: #{tpu_custom_call.1} parent=1 // pred_fallthru
      _
    %p66 = scmp.eq.s32.totalorder 0, 0
    // Predicated region
    $region34: #{tpu_custom_call.1} parent=1 // pred_check
      %p67 = pneg %p66
    $region35: #{tpu_custom_call.1} parent=1 // pred_check_branch
      %69 = sbr.rel (%p67) target = $region37
    $region36: #{tpu_custom_call.1} parent=1 // pred_region
      %70 = vst [vmem:[#allocation2] sm:$0xff] 0.0
    $region37: #{tpu_custom_call.1} parent=1 // pred_fallthru
      _
    %v71 = vld [vmem:[#allocation3] sm:$0xff]
    %v72 = vld [vmem:[#allocation6] sm:$0xff]
    %v73 = vld [vmem:[#allocation6 + $0x8] sm:$0xff]
    %v74 = vld [vmem:[#allocation6 + $0x10] sm:$0xff]
    %v75 = vld [vmem:[#allocation6 + $0x18] sm:$0xff]
    %v76 = vld [vmem:[%s2] sm:$0x1]
    %v78 = vperm.slane %v76, 0
    %vm80 = vcmask 261120
    %v82 = vsel %vm80, %v71, 0
    %84 = vmatpush.msra.mxu0 0.0
    %85 = vmatpush.msra.mxu0 0.0
    %86 = vmatpush.msra.mxu0 0.0
    %87 = vmatpush.msra.mxu0 0.0
    %88 = vmatpush.msra.mxu0 0.0
    %89 = vmatpush.msra.mxu0 0.0
    %90 = vmatpush.msra.mxu0 0.0
    %91 = vmatpush.msra.mxu0 0.0
    %92 = vmatpush.msra.mxu0 0.0
    %93 = vmatpush.msra.mxu0 0.0
    %94 = vmatpush.msra.mxu0 0.0
    %95 = vmatpush.msra.mxu0 0.0
    %96 = vmatpush.msra.mxu0 %v75
    %97 = vmatpush.msra.mxu0 %v74
    %98 = vmatpush.msra.mxu0 %v73
    %99 = vmatpush.msra.mxu0 %v72
    %100 = vmatmul.f32.gmra.mxu0 %v82
    %v101 = vpop.f32.mrf.mxu0
    %v102 = vadd.f32 %v78, %v101
    %103 = vdwg.mxu0
    %v104 = vmax.f32 %v102, 0.0
    %v105 = vld [vmem:[#allocation2] sm:$0xff]
    %v106 = vld [vmem:[#allocation8] sm:$0xff]
    %v107 = vld [vmem:[#allocation8 + $0x8] sm:$0xff]
    %v108 = vld [vmem:[#allocation8 + $0x10] sm:$0xff]
    %v109 = vld [vmem:[#allocation8 + $0x18] sm:$0xff]
    %v110 = vld [vmem:[#allocation8 + $0x20] sm:$0xff]
    %v111 = vld [vmem:[#allocation8 + $0x28] sm:$0xff]
    %v112 = vld [vmem:[#allocation8 + $0x30] sm:$0xff]
    %v113 = vld [vmem:[#allocation8 + $0x38] sm:$0xff]
    %vm114 = vcmask 523264
    %v116 = vsel %vm114, %v104, 0
    %118 = vmatpush.msra.mxu0 0.0
    %119 = vmatpush.msra.mxu0 0.0
    %120 = vmatpush.msra.mxu0 0.0
    %121 = vmatpush.msra.mxu0 0.0
    %122 = vmatpush.msra.mxu0 0.0
    %123 = vmatpush.msra.mxu0 0.0
    %124 = vmatpush.msra.mxu0 0.0
    %125 = vmatpush.msra.mxu0 0.0
    %126 = vmatpush.msra.mxu0 %v113
    %127 = vmatpush.msra.mxu0 %v112
    %128 = vmatpush.msra.mxu0 %v111
    %129 = vmatpush.msra.mxu0 %v110
    %130 = vmatpush.msra.mxu0 %v109
    %131 = vmatpush.msra.mxu0 %v108
    %132 = vmatpush.msra.mxu0 %v107
    %133 = vmatpush.msra.mxu0 %v106
    %134 = vmatmul.f32.gmra.mxu0 %v116
    %v135 = vpop.f32.mrf.mxu0
    %v136 = vadd.f32 0.0, %v135
    %137 = vdwg.mxu0
    %v138 = vadd.f32 %v105, %v136
    %139 = vst [vmem:[#allocation2] sm:$0xff] %v138
    // Predicated region
    $region38: #{tpu_custom_call.1} parent=1 // pred_check
      %p140 = pneg %p66
    $region39: #{tpu_custom_call.1} parent=1 // pred_check_branch
      %142 = sbr.rel (%p140) target = $region41
    $region40: #{tpu_custom_call.1} parent=1 // pred_region
      %v143 = vld [vmem:[#allocation2] sm:$0xff]
      %v144 = vld [vmem:[%s4] sm:$0x1]
      %v146 = vperm.slane %v144, 0
      %v148 = vadd.f32 %v143, %v146
      %149 = vst [vmem:[#allocation9] sm:$0xff] %v148
    $region41: #{tpu_custom_call.1} parent=1 // pred_fallthru
      _
    // Predicated region
    $region42: #{tpu_custom_call.1} parent=1 // pred_check
      _
    $region43: #{tpu_custom_call.1} parent=1 // pred_check_branch
      %151 = sbr.rel (0) target = $region45
    $region44: #{tpu_custom_call.1} parent=1 // pred_region
      %153 = vsyncadd [#allocation5], 0
      %s155 = sshll.u32 [#allocation9], 4
      %s156 = int_to_ptr.vmem [resolvable:$true] %s155
      %s157 = sshll.u32 %s5, 4
      %s158 = int_to_ptr.hbm [resolvable:$true] %s157
      %160 = dma.vmem_to_hbm [thread:$0]  %s156, 128, %s158, [#allocation5]
    $region45: #{tpu_custom_call.1} parent=1 // pred_fallthru
      _
    // Predicated region
    $region46: #{tpu_custom_call.1} parent=1 // pred_check
      _
    $region47: #{tpu_custom_call.1} parent=1 // pred_check_branch
      %162 = sbr.rel (0) target = $region49
    $region48: #{tpu_custom_call.1} parent=1 // pred_region
      %164 = dma.done [#allocation5], 128
    $region49: #{tpu_custom_call.1} parent=1 // pred_fallthru
      _
    %165 = vsyncpa [#allocation4], 1
    %166 = vsyncpa [#allocation7], 1
    %167 = vsyncpa [#allocation5], 1

</llo_original>
